<compile_context>
chip_gen: v5e
topology: v5e:2x2
jax: 0.10.0
libtpu: 0.0.40
codegen_flags: <defaults>
</compile_context>

<pallas_src>
import functools

import jax
import jax.numpy as jnp
from jax.experimental import pallas as pl
from jax.experimental.pallas import tpu as pltpu


def _swiglu_mlp_kernel(x_ref, w1_ref, b1_ref, w2_ref, b2_ref, w3_ref, b3_ref,
                       o_ref, acc_ref):
    """One (TM token tile, TH hidden tile) step of the SwiGLU MLP."""
    h = pl.program_id(1)

    @pl.when(h == 0)
    def _init():
        acc_ref[...] = jnp.zeros_like(acc_ref)

    x = x_ref[...]                                               # (TM, D) compute dtype

    # gate branch: silu(x @ W1[:, h] + b1[h])   -- f32 epilogue
    g = jnp.dot(x, w1_ref[...], preferred_element_type=jnp.float32)
    g = g + b1_ref[...]                                          # (TM, TH) + (1, TH)
    g = g * jax.lax.logistic(g)                                  # SiLU on EUP, hidden under MXU

    # linear branch: x @ W2[:, h] + b2[h]
    u = jnp.dot(x, w2_ref[...], preferred_element_type=jnp.float32)
    u = u + b2_ref[...]

    hidden = (g * u).astype(w3_ref.dtype)                        # back to MXU operand dtype

    # accumulate this hidden slice's contribution to the output projection
    acc_ref[...] += jnp.dot(hidden, w3_ref[...],
                            preferred_element_type=jnp.float32)

    @pl.when(h == pl.num_programs(1) - 1)
    def _finalize():
        # b3 added exactly once; dropout is identity in eval mode.
        # TODO(synk): training-mode dropout (p=0.1) omitted; eval-mode dropout is identity.
        o_ref[...] = (acc_ref[...] + b3_ref[...]).astype(o_ref.dtype)


def _pick_tile(total, target, align):
    """Largest aligned divisor of `total` that is <= target, else full extent."""
    if total <= target:
        return total
    t = (target // align) * align
    while t >= align:
        if total % t == 0:
            return t
        t -= align
    return total  # full extent is always a legal block


def _vmem_estimate(tm, th, d, compute_itemsize, out_itemsize):
    buf = 2  # BlockSpec double-buffering
    est = 0
    est += buf * tm * d * compute_itemsize          # x tile
    est += buf * 2 * d * th * compute_itemsize      # w1, w2 tiles
    est += buf * th * d * compute_itemsize          # w3 tile
    est += buf * 2 * th * 4                         # b1, b2 tiles (f32)
    est += buf * d * 4                              # b3 tile (f32)
    est += buf * tm * d * out_itemsize              # out tile
    est += tm * d * 4                               # f32 accumulator scratch
    return est


@functools.partial(jax.jit, static_argnames=("compute_dtype", "tm_target", "th_target"))
def swiglu_mlp(x, w1, b1, w2, b2, w3, b3, *,
               compute_dtype=jnp.bfloat16, tm_target=256, th_target=512):
    """x: (M, D); w1,w2: (D, H); b1,b2: (H,); w3: (H, D); b3: (D,). Returns (M, D)."""
    M, D = x.shape
    H = w1.shape[1]

    compute_dtype = jnp.dtype(compute_dtype)
    c_item = compute_dtype.itemsize
    sub_align = 8 if c_item == 4 else 16

    TM = _pick_tile(M, tm_target, sub_align)   # token tile (second-minor)
    TH = _pick_tile(H, th_target, 128)         # hidden tile (lane-aligned)

    # MXU operands in compute dtype; biases stay f32 for the epilogue math.
    x_c = x.astype(compute_dtype)
    w1_c = w1.astype(compute_dtype)
    w2_c = w2.astype(compute_dtype)
    w3_c = w3.astype(compute_dtype)
    b1_2d = b1.astype(jnp.float32).reshape(1, H)
    b2_2d = b2.astype(jnp.float32).reshape(1, H)
    b3_2d = b3.astype(jnp.float32).reshape(1, D)

    vmem_limit = min(_vmem_estimate(TM, TH, D, c_item, x.dtype.itemsize) * 3 // 2
                     + (4 << 20), 64 << 20)

    grid = (M // TM, H // TH)

    return pl.pallas_call(
        _swiglu_mlp_kernel,
        out_shape=jax.ShapeDtypeStruct((M, D), x.dtype),
        grid_spec=pltpu.PrefetchScalarGridSpec(
            num_scalar_prefetch=0,
            grid=grid,
            in_specs=[
                pl.BlockSpec((TM, D), lambda i, h: (i, 0)),   # x: resident across H steps
                pl.BlockSpec((D, TH), lambda i, h: (0, h)),   # w1 slice
                pl.BlockSpec((1, TH), lambda i, h: (0, h)),   # b1 slice
                pl.BlockSpec((D, TH), lambda i, h: (0, h)),   # w2 slice
                pl.BlockSpec((1, TH), lambda i, h: (0, h)),   # b2 slice
                pl.BlockSpec((TH, D), lambda i, h: (h, 0)),   # w3 slice
                pl.BlockSpec((1, D), lambda i, h: (0, 0)),    # b3 (resident)
            ],
            out_specs=pl.BlockSpec((TM, D), lambda i, h: (i, 0)),
            scratch_shapes=[pltpu.VMEM((TM, D), jnp.float32)],
        ),
        compiler_params=pltpu.CompilerParams(
            dimension_semantics=("parallel", "arbitrary"),
            vmem_limit_bytes=vmem_limit,
        ),
    )(x_c, w1_c, b1_2d, w2_c, b2_2d, w3_c, b3_2d)


def init_params(key, dim, hidden_dim, dtype=jnp.float32):
    """Deterministic param init matching nn.Linear shapes (stored transposed)."""
    k1, k2, k3, k4, k5, k6 = jax.random.split(key, 6)
    scale1 = 1.0 / jnp.sqrt(dim)
    scale3 = 1.0 / jnp.sqrt(hidden_dim)
    # PyTorch nn.Linear(dim, hidden): weight (hidden, dim). We store transposed (dim, hidden).
    w1 = jax.random.uniform(k1, (dim, hidden_dim), dtype, -scale1, scale1)
    b1 = jax.random.uniform(k2, (hidden_dim,), dtype, -scale1, scale1)
    w2 = jax.random.uniform(k3, (dim, hidden_dim), dtype, -scale1, scale1)
    b2 = jax.random.uniform(k4, (hidden_dim,), dtype, -scale1, scale1)
    w3 = jax.random.uniform(k5, (hidden_dim, dim), dtype, -scale3, scale3)
    b3 = jax.random.uniform(k6, (dim,), dtype, -scale3, scale3)
    return w1, b1, w2, b2, w3, b3


def reference_mlp(x, w1, b1, w2, b2, w3, b3, compute_dtype=jnp.bfloat16):
    """Pure-JAX reference using the same operand dtypes as the kernel."""
    xc = x.astype(compute_dtype)
    g = jnp.dot(xc, w1.astype(compute_dtype),
                preferred_element_type=jnp.float32) + b1.astype(jnp.float32)
    g = g * jax.nn.sigmoid(g)
    u = jnp.dot(xc, w2.astype(compute_dtype),
                preferred_element_type=jnp.float32) + b2.astype(jnp.float32)
    hidden = (g * u).astype(compute_dtype)
    y = jnp.dot(hidden, w3.astype(compute_dtype),
                preferred_element_type=jnp.float32) + b3.astype(jnp.float32)
    return y.astype(x.dtype)


if __name__ == "__main__":
    # Small but lane-aligned shapes (D, H multiples of 128 keep stores lane-dense).
    batch, seq, dim, hidden_dim = 2, 64, 128, 256
    key = jax.random.PRNGKey(0)
    kx, kp = jax.random.split(key)

    x = jax.random.normal(kx, (batch, seq, dim), jnp.float32)
    params = init_params(kp, dim, hidden_dim)

    # Flatten (batch, seq) -> tokens for the kernel, then restore shape.
    x2d = x.reshape(batch * seq, dim)
    # Small tile targets so both grid axes (token-parallel + hidden-accumulate)
    # are exercised at these test shapes; defaults (256/512) suit real model dims.
    out2d = swiglu_mlp(x2d, *params, tm_target=64, th_target=128)
    out = out2d.reshape(batch, seq, dim)
    jax.block_until_ready(out)

    # Sanity check against a pure-JAX reference with matching operand dtypes.
    ref = reference_mlp(x2d, *params).reshape(batch, seq, dim)
    assert jnp.allclose(out, ref, atol=2e-3, rtol=2e-3), "mismatch vs reference"

    print("KERNEL_OK")
</pallas_src>

<mosaic_0001>
module attributes {stable_mosaic.version = 11 : i64} {
  func.func @_swiglu_mlp_kernel(%arg0: i32, %arg1: i32, %arg2: memref<64x128xbf16, #tpu.memory_space<vmem>>, %arg3: memref<128x128xbf16, #tpu.memory_space<vmem>>, %arg4: memref<1x128xf32, #tpu.memory_space<vmem>>, %arg5: memref<128x128xbf16, #tpu.memory_space<vmem>>, %arg6: memref<1x128xf32, #tpu.memory_space<vmem>>, %arg7: memref<128x128xbf16, #tpu.memory_space<vmem>>, %arg8: memref<1x128xf32, #tpu.memory_space<vmem>>, %arg9: memref<64x128xf32, #tpu.memory_space<vmem>>, %arg10: memref<64x128xf32, #tpu.memory_space<vmem>>) attributes {dimension_semantics = [#tpu.dimension_semantics<parallel>, #tpu.dimension_semantics<arbitrary>], iteration_bounds = array<i64: 2, 2>, scalar_prefetch = 0 : i64, scratch_operands = 1 : i64, tpu.core_type = #tpu.core_type<tc>, window_params = [{transform_indices = @transform_0, window_bounds = array<i64: 64, 128>}, {transform_indices = @transform_1, window_bounds = array<i64: 128, 128>}, {transform_indices = @transform_2, window_bounds = array<i64: 1, 128>}, {transform_indices = @transform_3, window_bounds = array<i64: 128, 128>}, {transform_indices = @transform_4, window_bounds = array<i64: 1, 128>}, {transform_indices = @transform_5, window_bounds = array<i64: 128, 128>}, {pipeline_mode = #tpu.pipeline_mode<synchronous>, transform_indices = @transform_6, window_bounds = array<i64: 1, 128>}, {transform_indices = @transform_7, window_bounds = array<i64: 64, 128>}]} {
    %c0_i32 = arith.constant 0 : i32
    %0 = arith.cmpi eq, %arg1, %c0_i32 : i32
    %1 = arith.extui %0 : i1 to i32
    %c0_i32_0 = arith.constant 0 : i32
    %2 = arith.cmpi ne, %1, %c0_i32_0 : i32
    scf.if %2 {
      %cst_20 = arith.constant 0.000000e+00 : f32
      %30 = vector.broadcast %cst_20 : f32 to vector<64x128xf32>
      %c0_21 = arith.constant 0 : index
      %c0_22 = arith.constant 0 : index
      %31 = vector.load %arg10[%c0_21, %c0_22] : memref<64x128xf32, #tpu.memory_space<vmem>>, vector<64x128xf32>
      tpu.vector_store %arg10[%c0_21, %c0_22], %30 {strides = array<i32>} : memref<64x128xf32, #tpu.memory_space<vmem>>, vector<64x128xf32>,
    } else {
    }
    %c0 = arith.constant 0 : index
    %c0_1 = arith.constant 0 : index
    %3 = vector.load %arg2[%c0, %c0_1] : memref<64x128xbf16, #tpu.memory_space<vmem>>, vector<64x128xbf16>
    %c0_2 = arith.constant 0 : index
    %c0_3 = arith.constant 0 : index
    %4 = vector.load %arg3[%c0_2, %c0_3] : memref<128x128xbf16, #tpu.memory_space<vmem>>, vector<128x128xbf16>
    %cst = arith.constant dense<0.000000e+00> : vector<64x128xf32>
    %5 = tpu.matmul %3, %4, %cst {dimension_numbers = #tpu.dot_dimension_numbers<[1], [0], [0], [1], [0, 0, 1, 1], [], []>} : vector<64x128xbf16>, vector<128x128xbf16>, vector<64x128xf32> -> vector<64x128xf32>
    %c0_4 = arith.constant 0 : index
    %c0_5 = arith.constant 0 : index
    %6 = vector.load %arg4[%c0_4, %c0_5] : memref<1x128xf32, #tpu.memory_space<vmem>>, vector<1x128xf32>
    %7 = vector.broadcast %6 : vector<1x128xf32> to vector<64x128xf32>
    %8 = arith.addf %5, %7 : vector<64x128xf32>
    %9 = arith.negf %8 : vector<64x128xf32>
    %10 = math.exp %9 : vector<64x128xf32>
    %cst_6 = arith.constant 1.000000e+00 : f32
    %11 = vector.broadcast %cst_6 : f32 to vector<64x128xf32>
    %12 = arith.addf %11, %10 : vector<64x128xf32>
    %13 = arith.divf %11, %12 : vector<64x128xf32>
    %14 = arith.mulf %8, %13 : vector<64x128xf32>
    %c0_7 = arith.constant 0 : index
    %c0_8 = arith.constant 0 : index
    %15 = vector.load %arg5[%c0_7, %c0_8] : memref<128x128xbf16, #tpu.memory_space<vmem>>, vector<128x128xbf16>
    %cst_9 = arith.constant dense<0.000000e+00> : vector<64x128xf32>
    %16 = tpu.matmul %3, %15, %cst_9 {dimension_numbers = #tpu.dot_dimension_numbers<[1], [0], [0], [1], [0, 0, 1, 1], [], []>} : vector<64x128xbf16>, vector<128x128xbf16>, vector<64x128xf32> -> vector<64x128xf32>
    %c0_10 = arith.constant 0 : index
    %c0_11 = arith.constant 0 : index
    %17 = vector.load %arg6[%c0_10, %c0_11] : memref<1x128xf32, #tpu.memory_space<vmem>>, vector<1x128xf32>
    %18 = vector.broadcast %17 : vector<1x128xf32> to vector<64x128xf32>
    %19 = arith.addf %16, %18 : vector<64x128xf32>
    %20 = arith.mulf %14, %19 : vector<64x128xf32>
    %21 = arith.truncf %20 : vector<64x128xf32> to vector<64x128xbf16>
    %c0_12 = arith.constant 0 : index
    %c0_13 = arith.constant 0 : index
    %22 = vector.load %arg10[%c0_12, %c0_13] : memref<64x128xf32, #tpu.memory_space<vmem>>, vector<64x128xf32>
    %c0_14 = arith.constant 0 : index
    %c0_15 = arith.constant 0 : index
    %23 = vector.load %arg7[%c0_14, %c0_15] : memref<128x128xbf16, #tpu.memory_space<vmem>>, vector<128x128xbf16>
    %cst_16 = arith.constant dense<0.000000e+00> : vector<64x128xf32>
    %24 = tpu.matmul %21, %23, %cst_16 {dimension_numbers = #tpu.dot_dimension_numbers<[1], [0], [0], [1], [0, 0, 1, 1], [], []>} : vector<64x128xbf16>, vector<128x128xbf16>, vector<64x128xf32> -> vector<64x128xf32>
    %25 = arith.addf %22, %24 : vector<64x128xf32>
    %c0_17 = arith.constant 0 : index
    %c0_18 = arith.constant 0 : index
    %26 = vector.load %arg10[%c0_17, %c0_18] : memref<64x128xf32, #tpu.memory_space<vmem>>, vector<64x128xf32>
    tpu.vector_store %arg10[%c0_17, %c0_18], %25 {strides = array<i32>} : memref<64x128xf32, #tpu.memory_space<vmem>>, vector<64x128xf32>,
    %c1_i32 = arith.constant 1 : i32
    %27 = arith.cmpi eq, %arg1, %c1_i32 : i32
    %28 = arith.extui %27 : i1 to i32
    %c0_i32_19 = arith.constant 0 : i32
    %29 = arith.cmpi ne, %28, %c0_i32_19 : i32
    scf.if %29 {
      %c0_20 = arith.constant 0 : index
      %c0_21 = arith.constant 0 : index
      %30 = vector.load %arg10[%c0_20, %c0_21] : memref<64x128xf32, #tpu.memory_space<vmem>>, vector<64x128xf32>
      %c0_22 = arith.constant 0 : index
      %c0_23 = arith.constant 0 : index
      %31 = vector.load %arg8[%c0_22, %c0_23] : memref<1x128xf32, #tpu.memory_space<vmem>>, vector<1x128xf32>
      %32 = vector.broadcast %31 : vector<1x128xf32> to vector<64x128xf32>
      %33 = arith.addf %30, %32 : vector<64x128xf32>
      %c0_24 = arith.constant 0 : index
      %c0_25 = arith.constant 0 : index
      %34 = vector.load %arg9[%c0_24, %c0_25] : memref<64x128xf32, #tpu.memory_space<vmem>>, vector<64x128xf32>
      tpu.vector_store %arg9[%c0_24, %c0_25], %33 {strides = array<i32>} : memref<64x128xf32, #tpu.memory_space<vmem>>, vector<64x128xf32>,
    } else {
    }
    return
  }
  func.func @transform_0(%arg0: i32, %arg1: i32) -> (i32, i32) {
    %c0_i32 = arith.constant 0 : i32
    %c0_i32_0 = arith.constant 0 : i32
    return %arg0, %c0_i32 : i32, i32
  }
  func.func @transform_1(%arg0: i32, %arg1: i32) -> (i32, i32) {
    %c0_i32 = arith.constant 0 : i32
    %c0_i32_0 = arith.constant 0 : i32
    return %c0_i32, %arg1 : i32, i32
  }
  func.func @transform_2(%arg0: i32, %arg1: i32) -> (i32, i32) {
    %c0_i32 = arith.constant 0 : i32
    %c0_i32_0 = arith.constant 0 : i32
    return %c0_i32, %arg1 : i32, i32
  }
  func.func @transform_3(%arg0: i32, %arg1: i32) -> (i32, i32) {
    %c0_i32 = arith.constant 0 : i32
    %c0_i32_0 = arith.constant 0 : i32
    return %c0_i32, %arg1 : i32, i32
  }
  func.func @transform_4(%arg0: i32, %arg1: i32) -> (i32, i32) {
    %c0_i32 = arith.constant 0 : i32
    %c0_i32_0 = arith.constant 0 : i32
    return %c0_i32, %arg1 : i32, i32
  }
  func.func @transform_5(%arg0: i32, %arg1: i32) -> (i32, i32) {
    %c0_i32 = arith.constant 0 : i32
    %c0_i32_0 = arith.constant 0 : i32
    return %arg1, %c0_i32 : i32, i32
  }
  func.func @transform_6(%arg0: i32, %arg1: i32) -> (i32, i32) {
    %c0_i32 = arith.constant 0 : i32
    %c0_i32_0 = arith.constant 0 : i32
    %c0_i32_1 = arith.constant 0 : i32
    return %c0_i32, %c0_i32_0 : i32, i32
  }
  func.func @transform_7(%arg0: i32, %arg1: i32) -> (i32, i32) {
    %c0_i32 = arith.constant 0 : i32
    %c0_i32_0 = arith.constant 0 : i32
    return %arg0, %c0_i32 : i32, i32
  }
}

</mosaic_0001>

<llo_original>
// kernel: swiglu_mlp.1
$region0: #{swiglu_mlp.1}
  #allocation0 [shape = 'u32[]', space=smem, size = 0x4, offset = 0x4, fixed_abs, tag = 'smem constant byte address 0x4 - core index']
  #allocation1 [shape = 'u32[72,128]{1,0:T(1,128)}', space=vmem, size = 0x9000, scoped, tag = 'internal scratch']
  #allocation2 [shape = 'f32[64,128]{1,0:T(8,128)}', space=vmem, size = 0x8000, scoped, tag = 'scratch operand']
  %s0 = inlined_call_operand.vmem [shape: bf16[128,128], index: 0, kind: input, shape index: {}]
  %s1 = inlined_call_operand.vmem [shape: bf16[128,256], index: 1, kind: input, shape index: {}]
  %s2 = inlined_call_operand.vmem [shape: f32[1,256], index: 2, kind: input, shape index: {}]
  %s3 = inlined_call_operand.vmem [shape: bf16[128,256], index: 3, kind: input, shape index: {}]
  %s4 = inlined_call_operand.vmem [shape: f32[1,256], index: 4, kind: input, shape index: {}]
  %s5 = inlined_call_operand.vmem [shape: bf16[256,128], index: 5, kind: input, shape index: {}]
  %s6 = inlined_call_operand.vmem [shape: f32[1,128], index: 6, kind: input, shape index: {}]
  %s7 = inlined_call_operand.hbm [shape: f32[128,128], index: 7, kind: output, shape index: {}]
  %s8 = sld [smem:[#allocation0]]
  $region151: #{swiglu_mlp.1} parent=0
    _
  %s10 = ssub.s32 1, %s8
  %s11 = scalar_select 0, %s10, %s8
  $region1: #{swiglu_mlp.1} parent=0
    #allocation3 [shape = 'u8[65536]{0}', space=vmem, size = 0x10000, scoped, tag = 'input window, operand 1']
    #allocation4 [shape = 'u8[65536]{0}', space=vmem, size = 0x10000, scoped, tag = 'input window, operand 3']
    #allocation5 [shape = 'u8[65536]{0}', space=vmem, size = 0x10000, scoped, tag = 'output window, operand 0']
    #allocation6 [shape = 's32[2]{0}', space=sflag, size = 0x8, scoped, tag = 'scoped memory for swiglu_mlp.1']
    %12 = vsyncpa [#allocation6], 0
    %s13 = scalar_lea.sflag [#allocation6], 1
    %14 = vsyncpa %s13, 0
    loop: start=0, step=1, limit=6
    $region2: #{swiglu_mlp.1} parent=1 // loop_pre_header
      _
    $region3: #{swiglu_mlp.1} parent=1 // loop_header
      %s16 = sphi 0, %s20
      %p17 = scmp.ge.s32.totalorder %s16, 6
      %s23 = sphi 0, %s35
      %s24 = sphi 0, %s31
      %s25 = sphi 0, %s23
      %s26 = sphi 0, %s24
      %s27 = sphi 0, %s25
      %s28 = sphi 0, %s26
      %s38 = sphi 0, %s40
      %s41 = sphi 0, %s38
      %s42 = sphi 0, %s41
      %s58 = sphi 0, %s42
      %s64 = sphi 0, %s66
      %s67 = sphi 0, %s64
      %s68 = sphi 0, %s67
      %s84 = sphi 0, %s68
      %s90 = sphi 0, %s92
      %s93 = sphi 0, %s90
      %s94 = sphi 0, %s93
      %s110 = sphi 0, %s94
      %s116 = sphi 0, %s118
      %s119 = sphi 0, %s116
      %s120 = sphi 0, %s119
      %s136 = sphi 0, %s120
      %s142 = sphi 0, %s144
      %s145 = sphi 0, %s142
      %s146 = sphi 0, %s145
      %s162 = sphi 0, %s146
      %s168 = sphi 0, %s170
      %s171 = sphi 0, %s168
      %s172 = sphi 0, %s171
      %s188 = sphi 0, %s172
      %s192 = sphi 0, %s192
      %s194 = sphi 0, %s192
      %s195 = sphi 0, %s194
      %s209 = sphi 0, %s195
      %s215 = sphi 0, %s217
      %s218 = sphi 0, %s215
      %s219 = sphi 0, %s218
      %s235 = sphi 0, %s219
    $region4: #{swiglu_mlp.1} parent=1 // loop_header_branch
      %19 = sbr.rel (%p17) target = $region8
    $region5: #{swiglu_mlp.1} parent=1 // loop_body
      %s21 = ssub.s32 %s16, 1
      %s22 = ssub.s32 %s16, 2
      %s29 = sadd.s32 1, %s24
      %p30 = scmp.ge.s32.totalorder %s29, 2
      %s31 = scalar_select %p30, 0, %s29
      %s32 = sadd.s32 1, %s23
      %s33 = scalar_select %p30, %s32, %s23
      %p34 = scmp.ge.s32.totalorder %s33, 2
      %s35 = scalar_select %p34, 0, %s33
      %s36 = ssub.s32 %s23, %s35
      %p37 = scmp.eq.s32.totalorder %s36, 0
      %s39 = sadd.s32 %s38, 1
      %s40 = scalar_select %p37, %s38, %s39
      %p43 = pneg %p37
      %p44 = scmp.eq.s32.totalorder %s16, 3
      %p45 = por %p43, %p44
      %p46 = scmp.ne.s32.totalorder %s38, %s41
      %p47 = scmp.eq.s32.totalorder %s16, 0
      %p48 = por %p46, %p47
      %p49 = scmp.ne.s32.totalorder %s38, %s41
      %p50 = scmp.eq.s32.totalorder %s21, 3
      %p51 = por %p49, %p50
      %p52 = scmp.ne.s32.totalorder %s41, %s42
      %p53 = scmp.eq.s32.totalorder %s21, 0
      %p54 = por %p52, %p53
      %p55 = scmp.ne.s32.totalorder %s41, %s42
      %p56 = scmp.eq.s32.totalorder %s22, 3
      %p57 = por %p55, %p56
      %p59 = scmp.ne.s32.totalorder %s42, %s58
      %p60 = scmp.eq.s32.totalorder %s22, 0
      %p61 = por %p59, %p60
      %s62 = ssub.s32 %s24, %s31
      %p63 = scmp.eq.s32.totalorder %s62, 0
      %s65 = sadd.s32 %s64, 1
      %s66 = scalar_select %p63, %s64, %s65
      %p69 = pneg %p63
      %p70 = scmp.eq.s32.totalorder %s16, 3
      %p71 = por %p69, %p70
      %p72 = scmp.ne.s32.totalorder %s64, %s67
      %p73 = scmp.eq.s32.totalorder %s16, 0
      %p74 = por %p72, %p73
      %p75 = scmp.ne.s32.totalorder %s64, %s67
      %p76 = scmp.eq.s32.totalorder %s21, 3
      %p77 = por %p75, %p76
      %p78 = scmp.ne.s32.totalorder %s67, %s68
      %p79 = scmp.eq.s32.totalorder %s21, 0
      %p80 = por %p78, %p79
      %p81 = scmp.ne.s32.totalorder %s67, %s68
      %p82 = scmp.eq.s32.totalorder %s22, 3
      %p83 = por %p81, %p82
      %p85 = scmp.ne.s32.totalorder %s68, %s84
      %p86 = scmp.eq.s32.totalorder %s22, 0
      %p87 = por %p85, %p86
      %s88 = ssub.s32 %s24, %s31
      %p89 = scmp.eq.s32.totalorder %s88, 0
      %s91 = sadd.s32 %s90, 1
      %s92 = scalar_select %p89, %s90, %s91
      %p95 = pneg %p89
      %p96 = scmp.eq.s32.totalorder %s16, 3
      %p97 = por %p95, %p96
      %p98 = scmp.ne.s32.totalorder %s90, %s93
      %p99 = scmp.eq.s32.totalorder %s16, 0
      %p100 = por %p98, %p99
      %p101 = scmp.ne.s32.totalorder %s90, %s93
      %p102 = scmp.eq.s32.totalorder %s21, 3
      %p103 = por %p101, %p102
      %p104 = scmp.ne.s32.totalorder %s93, %s94
      %p105 = scmp.eq.s32.totalorder %s21, 0
      %p106 = por %p104, %p105
      %p107 = scmp.ne.s32.totalorder %s93, %s94
      %p108 = scmp.eq.s32.totalorder %s22, 3
      %p109 = por %p107, %p108
      %p111 = scmp.ne.s32.totalorder %s94, %s110
      %p112 = scmp.eq.s32.totalorder %s22, 0
      %p113 = por %p111, %p112
      %s114 = ssub.s32 %s24, %s31
      %p115 = scmp.eq.s32.totalorder %s114, 0
      %s117 = sadd.s32 %s116, 1
      %s118 = scalar_select %p115, %s116, %s117
      %p121 = pneg %p115
      %p122 = scmp.eq.s32.totalorder %s16, 3
      %p123 = por %p121, %p122
      %p124 = scmp.ne.s32.totalorder %s116, %s119
      %p125 = scmp.eq.s32.totalorder %s16, 0
      %p126 = por %p124, %p125
      %p127 = scmp.ne.s32.totalorder %s116, %s119
      %p128 = scmp.eq.s32.totalorder %s21, 3
      %p129 = por %p127, %p128
      %p130 = scmp.ne.s32.totalorder %s119, %s120
      %p131 = scmp.eq.s32.totalorder %s21, 0
      %p132 = por %p130, %p131
      %p133 = scmp.ne.s32.totalorder %s119, %s120
      %p134 = scmp.eq.s32.totalorder %s22, 3
      %p135 = por %p133, %p134
      %p137 = scmp.ne.s32.totalorder %s120, %s136
      %p138 = scmp.eq.s32.totalorder %s22, 0
      %p139 = por %p137, %p138
      %s140 = ssub.s32 %s24, %s31
      %p141 = scmp.eq.s32.totalorder %s140, 0
      %s143 = sadd.s32 %s142, 1
      %s144 = scalar_select %p141, %s142, %s143
      %p147 = pneg %p141
      %p148 = scmp.eq.s32.totalorder %s16, 3
      %p149 = por %p147, %p148
      %p150 = scmp.ne.s32.totalorder %s142, %s145
      %p151 = scmp.eq.s32.totalorder %s16, 0
      %p152 = por %p150, %p151
      %p153 = scmp.ne.s32.totalorder %s142, %s145
      %p154 = scmp.eq.s32.totalorder %s21, 3
      %p155 = por %p153, %p154
      %p156 = scmp.ne.s32.totalorder %s145, %s146
      %p157 = scmp.eq.s32.totalorder %s21, 0
      %p158 = por %p156, %p157
      %p159 = scmp.ne.s32.totalorder %s145, %s146
      %p160 = scmp.eq.s32.totalorder %s22, 3
      %p161 = por %p159, %p160
      %p163 = scmp.ne.s32.totalorder %s146, %s162
      %p164 = scmp.eq.s32.totalorder %s22, 0
      %p165 = por %p163, %p164
      %s166 = ssub.s32 %s24, %s31
      %p167 = scmp.eq.s32.totalorder %s166, 0
      %s169 = sadd.s32 %s168, 1
      %s170 = scalar_select %p167, %s168, %s169
      %p173 = pneg %p167
      %p174 = scmp.eq.s32.totalorder %s16, 3
      %p175 = por %p173, %p174
      %p176 = scmp.ne.s32.totalorder %s168, %s171
      %p177 = scmp.eq.s32.totalorder %s16, 0
      %p178 = por %p176, %p177
      %p179 = scmp.ne.s32.totalorder %s168, %s171
      %p180 = scmp.eq.s32.totalorder %s21, 3
      %p181 = por %p179, %p180
      %p182 = scmp.ne.s32.totalorder %s171, %s172
      %p183 = scmp.eq.s32.totalorder %s21, 0
      %p184 = por %p182, %p183
      %p185 = scmp.ne.s32.totalorder %s171, %s172
      %p186 = scmp.eq.s32.totalorder %s22, 3
      %p187 = por %p185, %p186
      %p189 = scmp.ne.s32.totalorder %s172, %s188
      %p190 = scmp.eq.s32.totalorder %s22, 0
      %p191 = por %p189, %p190
      %s193 = sadd.s32 %s192, 1
      %p196 = scmp.eq.s32.totalorder %s16, 3
      %p197 = scmp.ne.s32.totalorder %s192, %s194
      %p198 = scmp.eq.s32.totalorder %s16, 0
      %p199 = por %p197, %p198
      %p200 = scmp.ne.s32.totalorder %s192, %s194
      %p201 = scmp.eq.s32.totalorder %s21, 3
      %p202 = por %p200, %p201
      %p203 = scmp.ne.s32.totalorder %s194, %s195
      %p204 = scmp.eq.s32.totalorder %s21, 0
      %p205 = por %p203, %p204
      %p206 = scmp.ne.s32.totalorder %s194, %s195
      %p207 = scmp.eq.s32.totalorder %s22, 3
      %p208 = por %p206, %p207
      %p210 = scmp.ne.s32.totalorder %s195, %s209
      %p211 = scmp.eq.s32.totalorder %s22, 0
      %p212 = por %p210, %p211
      %s213 = ssub.s32 %s23, %s35
      %p214 = scmp.eq.s32.totalorder %s213, 0
      %s216 = sadd.s32 %s215, 1
      %s217 = scalar_select %p214, %s215, %s216
      %p220 = pneg %p214
      %p221 = scmp.eq.s32.totalorder %s16, 3
      %p222 = por %p220, %p221
      %p223 = scmp.ne.s32.totalorder %s215, %s218
      %p224 = scmp.eq.s32.totalorder %s16, 0
      %p225 = por %p223, %p224
      %p226 = scmp.ne.s32.totalorder %s215, %s218
      %p227 = scmp.eq.s32.totalorder %s21, 3
      %p228 = por %p226, %p227
      %p229 = scmp.ne.s32.totalorder %s218, %s219
      %p230 = scmp.eq.s32.totalorder %s21, 0
      %p231 = por %p229, %p230
      %p232 = scmp.ne.s32.totalorder %s218, %s219
      %p233 = scmp.eq.s32.totalorder %s22, 3
      %p234 = por %p232, %p233
      %p236 = scmp.ne.s32.totalorder %s219, %s235
      %p237 = scmp.eq.s32.totalorder %s22, 0
      %p238 = por %p236, %p237
      %p239 = scmp.le.s32.totalorder 1, %s16
      %p240 = scmp.lt.s32.totalorder %s16, 5
      %p241 = pnand %p239, %p240
      %p242 = pneg %p241
      // Predicated region
      $region9: #{swiglu_mlp.1} parent=5 // pred_check
        _
      $region10: #{swiglu_mlp.1} parent=5 // pred_check_branch
        %244 = sbr.rel (%p241) target = $region12
      $region11: #{swiglu_mlp.1} parent=5 // pred_region
        %s245 = ssub.s32 %s16, 1
        // Predicated region
        $region13: #{swiglu_mlp.1} parent=11 // pred_check
          %p246 = pneg %p205
        $region14: #{swiglu_mlp.1} parent=11 // pred_check_branch
          %248 = sbr.rel (%p246) target = $region16
        $region15: #{swiglu_mlp.1} parent=11 // pred_region
          _
        $region16: #{swiglu_mlp.1} parent=11 // pred_fallthru
          _
      $region12: #{swiglu_mlp.1} parent=5 // pred_fallthru
        _
      %p249 = scmp.lt.s32.totalorder %s16, 4
      // Predicated region
      $region17: #{swiglu_mlp.1} parent=5 // pred_check
        %p250 = pneg %p249
      $region18: #{swiglu_mlp.1} parent=5 // pred_check_branch
        %252 = sbr.rel (%p250) target = $region20
      $region19: #{swiglu_mlp.1} parent=5 // pred_region
        // Predicated region
        $region21: #{swiglu_mlp.1} parent=19 // pred_check
          %p253 = pneg %p48
        $region22: #{swiglu_mlp.1} parent=19 // pred_check_branch
          %255 = sbr.rel (%p253) target = $region24
        $region23: #{swiglu_mlp.1} parent=19 // pred_region
          %s256 = smul.u32 8, %s23
          %p257 = scmp.lt.s32.totalorder %s256, 15
          %s258 = scalar_select %p257, %s256, 15
          %s259 = smul.addr %s258, 4
          %s260 = scalar_lea.vmem %s0, %s259
          %s261 = smul.u32 8, %s23
        $region24: #{swiglu_mlp.1} parent=19 // pred_fallthru
          _
        // Predicated region
        $region25: #{swiglu_mlp.1} parent=19 // pred_check
          %p262 = pneg %p74
        $region26: #{swiglu_mlp.1} parent=19 // pred_check_branch
          %264 = sbr.rel (%p262) target = $region28
        $region27: #{swiglu_mlp.1} parent=19 // pred_region
          %s265 = sand.u32 %s64, 1
          %s266 = sand.u32 %s64, 1
          %s267 = smul.addr %s266, 64
          %s268 = scalar_lea.vmem [#allocation3], %s267
          %s269 = smul.addr %s24, 4
          %s270 = scalar_lea.vmem %s1, %s269
          // Predicated region
          $region29: #{swiglu_mlp.1} parent=27 // pred_check
            _
          $region30: #{swiglu_mlp.1} parent=27 // pred_check_branch
            %272 = sbr.rel (0) target = $region32
          $region31: #{swiglu_mlp.1} parent=27 // pred_region
            // Predicated region
            $region33: #{swiglu_mlp.1} parent=31 // pred_check
              _
            $region34: #{swiglu_mlp.1} parent=31 // pred_check_branch
              %274 = sbr.rel target = $region36
            $region35: #{swiglu_mlp.1} parent=31 // pred_region
              // Predicated region
              $region48: #{swiglu_mlp.1} parent=35 // pred_check
                _
              $region49: #{swiglu_mlp.1} parent=35 // pred_check_branch
                %320 = sbr.rel (0) target = $region51
              $region50: #{swiglu_mlp.1} parent=35 // pred_region
                loop: start=0, step=1, limit=1
                $region52: #{swiglu_mlp.1} parent=50 // loop_pre_header
                  _
                $region53: #{swiglu_mlp.1} parent=50 // loop_header
                  %s322 = sphi 0, %s326
                  %p323 = scmp.ge.s32.totalorder %s322, 1
                  %s327 = sphi %s270, %s270
                  %s328 = sphi %s268, %s268
                $region54: #{swiglu_mlp.1} parent=50 // loop_header_branch
                  %325 = sbr.rel (%p323) target = $region58
                $region55: #{swiglu_mlp.1} parent=50 // loop_body
                  _
                $region56: #{swiglu_mlp.1} parent=50 // loop_footer
                  %s326 = sadd.s32 1, %s322
                $region57: #{swiglu_mlp.1} parent=50 // loop_footer_branch
                  %321 = sbr.rel target = $region53
                $region58: #{swiglu_mlp.1} parent=50 // loop_exit
                  _
                %s330 = ssub.s32 16, 1
                loop: start=0, step=1, limit=1
                $region59: #{swiglu_mlp.1} parent=50 // loop_pre_header
                  _
                $region60: #{swiglu_mlp.1} parent=50 // loop_header
                  %s332 = sphi 0, %s336
                  %p333 = scmp.ge.s32.totalorder %s332, 1
                  %s337 = sphi %s270, %s270
                  %s338 = sphi %s268, %s268
                $region61: #{swiglu_mlp.1} parent=50 // loop_header_branch
                  %335 = sbr.rel (%p333) target = $region65
                $region62: #{swiglu_mlp.1} parent=50 // loop_body
                  %v339 = vld [vmem:[%s337] sm:%s330]
                  %340 = vst [vmem:[%s338] sm:%s330] %v339
                  %v341 = vld [vmem:[%s337 + $0x8] sm:%s330]
                  %342 = vst [vmem:[%s338 + $0x4] sm:%s330] %v341
                  %v343 = vld [vmem:[%s337 + $0x10] sm:%s330]
                  %344 = vst [vmem:[%s338 + $0x8] sm:%s330] %v343
                  %v345 = vld [vmem:[%s337 + $0x18] sm:%s330]
                  %346 = vst [vmem:[%s338 + $0xc] sm:%s330] %v345
                  %v347 = vld [vmem:[%s337 + $0x20] sm:%s330]
                  %348 = vst [vmem:[%s338 + $0x10] sm:%s330] %v347
                  %v349 = vld [vmem:[%s337 + $0x28] sm:%s330]
                  %350 = vst [vmem:[%s338 + $0x14] sm:%s330] %v349
                  %v351 = vld [vmem:[%s337 + $0x30] sm:%s330]
                  %352 = vst [vmem:[%s338 + $0x18] sm:%s330] %v351
                  %v353 = vld [vmem:[%s337 + $0x38] sm:%s330]
                  %354 = vst [vmem:[%s338 + $0x1c] sm:%s330] %v353
                  %v355 = vld [vmem:[%s337 + $0x40] sm:%s330]
                  %356 = vst [vmem:[%s338 + $0x20] sm:%s330] %v355
                  %v357 = vld [vmem:[%s337 + $0x48] sm:%s330]
                  %358 = vst [vmem:[%s338 + $0x24] sm:%s330] %v357
                  %v359 = vld [vmem:[%s337 + $0x50] sm:%s330]
                  %360 = vst [vmem:[%s338 + $0x28] sm:%s330] %v359
                  %v361 = vld [vmem:[%s337 + $0x58] sm:%s330]
                  %362 = vst [vmem:[%s338 + $0x2c] sm:%s330] %v361
                  %v363 = vld [vmem:[%s337 + $0x60] sm:%s330]
                  %364 = vst [vmem:[%s338 + $0x30] sm:%s330] %v363
                  %v365 = vld [vmem:[%s337 + $0x68] sm:%s330]
                  %366 = vst [vmem:[%s338 + $0x34] sm:%s330] %v365
                  %v367 = vld [vmem:[%s337 + $0x70] sm:%s330]
                  %368 = vst [vmem:[%s338 + $0x38] sm:%s330] %v367
                  %v369 = vld [vmem:[%s337 + $0x78] sm:%s330]
                  %370 = vst [vmem:[%s338 + $0x3c] sm:%s330] %v369
                $region63: #{swiglu_mlp.1} parent=50 // loop_footer
                  %s336 = sadd.s32 1, %s332
                $region64: #{swiglu_mlp.1} parent=50 // loop_footer_branch
                  %331 = sbr.rel target = $region60
                $region65: #{swiglu_mlp.1} parent=50 // loop_exit
                  _
              $region51: #{swiglu_mlp.1} parent=35 // pred_fallthru
                _
            $region36: #{swiglu_mlp.1} parent=31 // pred_fallthru
              _
            // Predicated region
            $region37: #{swiglu_mlp.1} parent=31 // pred_check
              _
            $region38: #{swiglu_mlp.1} parent=31 // pred_check_branch
              %276 = sbr.rel (0) target = $region40
            $region39: #{swiglu_mlp.1} parent=31 // pred_region
              %s278 = ssub.s32 16, 1
              loop: start=0, step=1, limit=1
              $region41: #{swiglu_mlp.1} parent=39 // loop_pre_header
                _
              $region42: #{swiglu_mlp.1} parent=39 // loop_header
                %s280 = sphi 0, %s284
                %p281 = scmp.ge.s32.totalorder %s280, 1
                %s285 = sphi %s270, %s270
                %s286 = sphi %s268, %s268
              $region43: #{swiglu_mlp.1} parent=39 // loop_header_branch
                %283 = sbr.rel (%p281) target = $region47
              $region44: #{swiglu_mlp.1} parent=39 // loop_body
                %v287 = vld [vmem:[%s285] sm:%s278]
                %288 = vst [vmem:[%s286] sm:%s278] %v287
                %v289 = vld [vmem:[%s285 + $0x8] sm:%s278]
                %290 = vst [vmem:[%s286 + $0x4] sm:%s278] %v289
                %v291 = vld [vmem:[%s285 + $0x10] sm:%s278]
                %292 = vst [vmem:[%s286 + $0x8] sm:%s278] %v291
                %v293 = vld [vmem:[%s285 + $0x18] sm:%s278]
                %294 = vst [vmem:[%s286 + $0xc] sm:%s278] %v293
                %v295 = vld [vmem:[%s285 + $0x20] sm:%s278]
                %296 = vst [vmem:[%s286 + $0x10] sm:%s278] %v295
                %v297 = vld [vmem:[%s285 + $0x28] sm:%s278]
                %298 = vst [vmem:[%s286 + $0x14] sm:%s278] %v297
                %v299 = vld [vmem:[%s285 + $0x30] sm:%s278]
                %300 = vst [vmem:[%s286 + $0x18] sm:%s278] %v299
                %v301 = vld [vmem:[%s285 + $0x38] sm:%s278]
                %302 = vst [vmem:[%s286 + $0x1c] sm:%s278] %v301
                %v303 = vld [vmem:[%s285 + $0x40] sm:%s278]
                %304 = vst [vmem:[%s286 + $0x20] sm:%s278] %v303
                %v305 = vld [vmem:[%s285 + $0x48] sm:%s278]
                %306 = vst [vmem:[%s286 + $0x24] sm:%s278] %v305
                %v307 = vld [vmem:[%s285 + $0x50] sm:%s278]
                %308 = vst [vmem:[%s286 + $0x28] sm:%s278] %v307
                %v309 = vld [vmem:[%s285 + $0x58] sm:%s278]
                %310 = vst [vmem:[%s286 + $0x2c] sm:%s278] %v309
                %v311 = vld [vmem:[%s285 + $0x60] sm:%s278]
                %312 = vst [vmem:[%s286 + $0x30] sm:%s278] %v311
                %v313 = vld [vmem:[%s285 + $0x68] sm:%s278]
                %314 = vst [vmem:[%s286 + $0x34] sm:%s278] %v313
                %v315 = vld [vmem:[%s285 + $0x70] sm:%s278]
                %316 = vst [vmem:[%s286 + $0x38] sm:%s278] %v315
                %v317 = vld [vmem:[%s285 + $0x78] sm:%s278]
                %318 = vst [vmem:[%s286 + $0x3c] sm:%s278] %v317
              $region45: #{swiglu_mlp.1} parent=39 // loop_footer
                %s284 = sadd.s32 1, %s280
              $region46: #{swiglu_mlp.1} parent=39 // loop_footer_branch
                %279 = sbr.rel target = $region42
              $region47: #{swiglu_mlp.1} parent=39 // loop_exit
                _
            $region40: #{swiglu_mlp.1} parent=31 // pred_fallthru
              _
          $region32: #{swiglu_mlp.1} parent=27 // pred_fallthru
            _
          %371 = vnop
        $region28: #{swiglu_mlp.1} parent=19 // pred_fallthru
          _
        // Predicated region
        $region66: #{swiglu_mlp.1} parent=19 // pred_check
          %p372 = pneg %p100
        $region67: #{swiglu_mlp.1} parent=19 // pred_check_branch
          %374 = sbr.rel (%p372) target = $region69
        $region68: #{swiglu_mlp.1} parent=19 // pred_region
          %p375 = scmp.lt.s32.totalorder %s24, 1
          %s376 = scalar_select %p375, %s24, 1
          %s377 = scalar_lea.vmem %s2, %s376
        $region69: #{swiglu_mlp.1} parent=19 // pred_fallthru
          _
        // Predicated region
        $region70: #{swiglu_mlp.1} parent=19 // pred_check
          %p378 = pneg %p126
        $region71: #{swiglu_mlp.1} parent=19 // pred_check_branch
          %380 = sbr.rel (%p378) target = $region73
        $region72: #{swiglu_mlp.1} parent=19 // pred_region
          %s381 = sand.u32 %s116, 1
          %s382 = sand.u32 %s116, 1
          %s383 = smul.addr %s382, 64
          %s384 = scalar_lea.vmem [#allocation4], %s383
          %s385 = smul.addr %s24, 4
          %s386 = scalar_lea.vmem %s3, %s385
          // Predicated region
          $region74: #{swiglu_mlp.1} parent=72 // pred_check
            _
          $region75: #{swiglu_mlp.1} parent=72 // pred_check_branch
            %388 = sbr.rel (0) target = $region77
          $region76: #{swiglu_mlp.1} parent=72 // pred_region
            // Predicated region
            $region78: #{swiglu_mlp.1} parent=76 // pred_check
              _
            $region79: #{swiglu_mlp.1} parent=76 // pred_check_branch
              %390 = sbr.rel target = $region81
            $region80: #{swiglu_mlp.1} parent=76 // pred_region
              // Predicated region
              $region93: #{swiglu_mlp.1} parent=80 // pred_check
                _
              $region94: #{swiglu_mlp.1} parent=80 // pred_check_branch
                %436 = sbr.rel (0) target = $region96
              $region95: #{swiglu_mlp.1} parent=80 // pred_region
                loop: start=0, step=1, limit=1
                $region97: #{swiglu_mlp.1} parent=95 // loop_pre_header
                  _
                $region98: #{swiglu_mlp.1} parent=95 // loop_header
                  %s438 = sphi 0, %s442
                  %p439 = scmp.ge.s32.totalorder %s438, 1
                  %s443 = sphi %s386, %s386
                  %s444 = sphi %s384, %s384
                $region99: #{swiglu_mlp.1} parent=95 // loop_header_branch
                  %441 = sbr.rel (%p439) target = $region103
                $region100: #{swiglu_mlp.1} parent=95 // loop_body
                  _
                $region101: #{swiglu_mlp.1} parent=95 // loop_footer
                  %s442 = sadd.s32 1, %s438
                $region102: #{swiglu_mlp.1} parent=95 // loop_footer_branch
                  %437 = sbr.rel target = $region98
                $region103: #{swiglu_mlp.1} parent=95 // loop_exit
                  _
                %s446 = ssub.s32 16, 1
                loop: start=0, step=1, limit=1
                $region104: #{swiglu_mlp.1} parent=95 // loop_pre_header
                  _
                $region105: #{swiglu_mlp.1} parent=95 // loop_header
                  %s448 = sphi 0, %s452
                  %p449 = scmp.ge.s32.totalorder %s448, 1
                  %s453 = sphi %s386, %s386
                  %s454 = sphi %s384, %s384
                $region106: #{swiglu_mlp.1} parent=95 // loop_header_branch
                  %451 = sbr.rel (%p449) target = $region110
                $region107: #{swiglu_mlp.1} parent=95 // loop_body
                  %v455 = vld [vmem:[%s453] sm:%s446]
                  %456 = vst [vmem:[%s454] sm:%s446] %v455
                  %v457 = vld [vmem:[%s453 + $0x8] sm:%s446]
                  %458 = vst [vmem:[%s454 + $0x4] sm:%s446] %v457
                  %v459 = vld [vmem:[%s453 + $0x10] sm:%s446]
                  %460 = vst [vmem:[%s454 + $0x8] sm:%s446] %v459
                  %v461 = vld [vmem:[%s453 + $0x18] sm:%s446]
                  %462 = vst [vmem:[%s454 + $0xc] sm:%s446] %v461
                  %v463 = vld [vmem:[%s453 + $0x20] sm:%s446]
                  %464 = vst [vmem:[%s454 + $0x10] sm:%s446] %v463
                  %v465 = vld [vmem:[%s453 + $0x28] sm:%s446]
                  %466 = vst [vmem:[%s454 + $0x14] sm:%s446] %v465
                  %v467 = vld [vmem:[%s453 + $0x30] sm:%s446]
                  %468 = vst [vmem:[%s454 + $0x18] sm:%s446] %v467
                  %v469 = vld [vmem:[%s453 + $0x38] sm:%s446]
                  %470 = vst [vmem:[%s454 + $0x1c] sm:%s446] %v469
                  %v471 = vld [vmem:[%s453 + $0x40] sm:%s446]
                  %472 = vst [vmem:[%s454 + $0x20] sm:%s446] %v471
                  %v473 = vld [vmem:[%s453 + $0x48] sm:%s446]
                  %474 = vst [vmem:[%s454 + $0x24] sm:%s446] %v473
                  %v475 = vld [vmem:[%s453 + $0x50] sm:%s446]
                  %476 = vst [vmem:[%s454 + $0x28] sm:%s446] %v475
                  %v477 = vld [vmem:[%s453 + $0x58] sm:%s446]
                  %478 = vst [vmem:[%s454 + $0x2c] sm:%s446] %v477
                  %v479 = vld [vmem:[%s453 + $0x60] sm:%s446]
                  %480 = vst [vmem:[%s454 + $0x30] sm:%s446] %v479
                  %v481 = vld [vmem:[%s453 + $0x68] sm:%s446]
                  %482 = vst [vmem:[%s454 + $0x34] sm:%s446] %v481
                  %v483 = vld [vmem:[%s453 + $0x70] sm:%s446]
                  %484 = vst [vmem:[%s454 + $0x38] sm:%s446] %v483
                  %v485 = vld [vmem:[%s453 + $0x78] sm:%s446]
                  %486 = vst [vmem:[%s454 + $0x3c] sm:%s446] %v485
                $region108: #{swiglu_mlp.1} parent=95 // loop_footer
                  %s452 = sadd.s32 1, %s448
                $region109: #{swiglu_mlp.1} parent=95 // loop_footer_branch
                  %447 = sbr.rel target = $region105
                $region110: #{swiglu_mlp.1} parent=95 // loop_exit
                  _
              $region96: #{swiglu_mlp.1} parent=80 // pred_fallthru
                _
            $region81: #{swiglu_mlp.1} parent=76 // pred_fallthru
              _
            // Predicated region
            $region82: #{swiglu_mlp.1} parent=76 // pred_check
              _
            $region83: #{swiglu_mlp.1} parent=76 // pred_check_branch
              %392 = sbr.rel (0) target = $region85
            $region84: #{swiglu_mlp.1} parent=76 // pred_region
              %s394 = ssub.s32 16, 1
              loop: start=0, step=1, limit=1
              $region86: #{swiglu_mlp.1} parent=84 // loop_pre_header
                _
              $region87: #{swiglu_mlp.1} parent=84 // loop_header
                %s396 = sphi 0, %s400
                %p397 = scmp.ge.s32.totalorder %s396, 1
                %s401 = sphi %s386, %s386
                %s402 = sphi %s384, %s384
              $region88: #{swiglu_mlp.1} parent=84 // loop_header_branch
                %399 = sbr.rel (%p397) target = $region92
              $region89: #{swiglu_mlp.1} parent=84 // loop_body
                %v403 = vld [vmem:[%s401] sm:%s394]
                %404 = vst [vmem:[%s402] sm:%s394] %v403
                %v405 = vld [vmem:[%s401 + $0x8] sm:%s394]
                %406 = vst [vmem:[%s402 + $0x4] sm:%s394] %v405
                %v407 = vld [vmem:[%s401 + $0x10] sm:%s394]
                %408 = vst [vmem:[%s402 + $0x8] sm:%s394] %v407
                %v409 = vld [vmem:[%s401 + $0x18] sm:%s394]
                %410 = vst [vmem:[%s402 + $0xc] sm:%s394] %v409
                %v411 = vld [vmem:[%s401 + $0x20] sm:%s394]
                %412 = vst [vmem:[%s402 + $0x10] sm:%s394] %v411
                %v413 = vld [vmem:[%s401 + $0x28] sm:%s394]
                %414 = vst [vmem:[%s402 + $0x14] sm:%s394] %v413
                %v415 = vld [vmem:[%s401 + $0x30] sm:%s394]
                %416 = vst [vmem:[%s402 + $0x18] sm:%s394] %v415
                %v417 = vld [vmem:[%s401 + $0x38] sm:%s394]
                %418 = vst [vmem:[%s402 + $0x1c] sm:%s394] %v417
                %v419 = vld [vmem:[%s401 + $0x40] sm:%s394]
                %420 = vst [vmem:[%s402 + $0x20] sm:%s394] %v419
                %v421 = vld [vmem:[%s401 + $0x48] sm:%s394]
                %422 = vst [vmem:[%s402 + $0x24] sm:%s394] %v421
                %v423 = vld [vmem:[%s401 + $0x50] sm:%s394]
                %424 = vst [vmem:[%s402 + $0x28] sm:%s394] %v423
                %v425 = vld [vmem:[%s401 + $0x58] sm:%s394]
                %426 = vst [vmem:[%s402 + $0x2c] sm:%s394] %v425
                %v427 = vld [vmem:[%s401 + $0x60] sm:%s394]
                %428 = vst [vmem:[%s402 + $0x30] sm:%s394] %v427
                %v429 = vld [vmem:[%s401 + $0x68] sm:%s394]
                %430 = vst [vmem:[%s402 + $0x34] sm:%s394] %v429
                %v431 = vld [vmem:[%s401 + $0x70] sm:%s394]
                %432 = vst [vmem:[%s402 + $0x38] sm:%s394] %v431
                %v433 = vld [vmem:[%s401 + $0x78] sm:%s394]
                %434 = vst [vmem:[%s402 + $0x3c] sm:%s394] %v433
              $region90: #{swiglu_mlp.1} parent=84 // loop_footer
                %s400 = sadd.s32 1, %s396
              $region91: #{swiglu_mlp.1} parent=84 // loop_footer_branch
                %395 = sbr.rel target = $region87
              $region92: #{swiglu_mlp.1} parent=84 // loop_exit
                _
            $region85: #{swiglu_mlp.1} parent=76 // pred_fallthru
              _
          $region77: #{swiglu_mlp.1} parent=72 // pred_fallthru
            _
          %487 = vnop
        $region73: #{swiglu_mlp.1} parent=19 // pred_fallthru
          _
        // Predicated region
        $region111: #{swiglu_mlp.1} parent=19 // pred_check
          %p488 = pneg %p152
        $region112: #{swiglu_mlp.1} parent=19 // pred_check_branch
          %490 = sbr.rel (%p488) target = $region114
        $region113: #{swiglu_mlp.1} parent=19 // pred_region
          %p491 = scmp.lt.s32.totalorder %s24, 1
          %s492 = scalar_select %p491, %s24, 1
          %s493 = scalar_lea.vmem %s4, %s492
        $region114: #{swiglu_mlp.1} parent=19 // pred_fallthru
          _
        // Predicated region
        $region115: #{swiglu_mlp.1} parent=19 // pred_check
          %p494 = pneg %p178
        $region116: #{swiglu_mlp.1} parent=19 // pred_check_branch
          %496 = sbr.rel (%p494) target = $region118
        $region117: #{swiglu_mlp.1} parent=19 // pred_region
          %s497 = smul.u32 16, %s24
          %p498 = scmp.lt.s32.totalorder %s497, 31
          %s499 = scalar_select %p498, %s497, 31
          %s500 = smul.addr %s499, 4
          %s501 = scalar_lea.vmem %s5, %s500
          %s502 = smul.u32 16, %s24
        $region118: #{swiglu_mlp.1} parent=19 // pred_fallthru
          _
      $region20: #{swiglu_mlp.1} parent=5 // pred_fallthru
        _
      %p503 = scmp.le.s32.totalorder 1, %s16
      %p504 = scmp.lt.s32.totalorder %s16, 5
      %p505 = pnand %p503, %p504
      %p506 = pneg %p505
      // Predicated region
      $region119: #{swiglu_mlp.1} parent=5 // pred_check
        _
      $region120: #{swiglu_mlp.1} parent=5 // pred_check_branch
        %508 = sbr.rel (%p505) target = $region122
      $region121: #{swiglu_mlp.1} parent=5 // pred_region
        %s509 = ssub.s32 %s16, 1
        %s510 = sand.u32 %s67, 1
        %s511 = sand.u32 %s67, 1
        %s512 = smul.addr %s511, 64
        %s513 = scalar_lea.vmem [#allocation3], %s512
        // Predicated region
        $region123: #{swiglu_mlp.1} parent=121 // pred_check
          %p514 = pneg %p80
        $region124: #{swiglu_mlp.1} parent=121 // pred_check_branch
          %516 = sbr.rel (%p514) target = $region126
        $region125: #{swiglu_mlp.1} parent=121 // pred_region
          _
        $region126: #{swiglu_mlp.1} parent=121 // pred_fallthru
          _
        %s517 = sand.u32 %s119, 1
        %s518 = sand.u32 %s119, 1
        %s519 = smul.addr %s518, 64
        %s520 = scalar_lea.vmem [#allocation4], %s519
        // Predicated region
        $region127: #{swiglu_mlp.1} parent=121 // pred_check
          %p521 = pneg %p132
        $region128: #{swiglu_mlp.1} parent=121 // pred_check_branch
          %523 = sbr.rel (%p521) target = $region130
        $region129: #{swiglu_mlp.1} parent=121 // pred_region
          _
        $region130: #{swiglu_mlp.1} parent=121 // pred_fallthru
          _
        %s524 = smul.u32 8, %s25
        %p525 = scmp.lt.s32.totalorder %s524, 15
        %s526 = scalar_select %p525, %s524, 15
        %s527 = smul.addr %s526, 4
        %s528 = scalar_lea.vmem %s0, %s527
        %p529 = pneg %p54
        %p530 = pneg %p51
        %s531 = sand.u32 %s67, 1
        %s532 = sand.u32 %s67, 1
        %s533 = smul.addr %s532, 64
        %s534 = scalar_lea.vmem [#allocation3], %s533
        %p535 = pneg %p80
        %p536 = pneg %p77
        %p537 = scmp.lt.s32.totalorder %s26, 1
        %s538 = scalar_select %p537, %s26, 1
        %s539 = scalar_lea.vmem %s2, %s538
        %p540 = pneg %p106
        %p541 = pneg %p103
        %s542 = sand.u32 %s119, 1
        %s543 = sand.u32 %s119, 1
        %s544 = smul.addr %s543, 64
        %s545 = scalar_lea.vmem [#allocation4], %s544
        %p546 = pneg %p132
        %p547 = pneg %p129
        %p548 = scmp.lt.s32.totalorder %s26, 1
        %s549 = scalar_select %p548, %s26, 1
        %s550 = scalar_lea.vmem %s4, %s549
        %p551 = pneg %p158
        %p552 = pneg %p155
        %s553 = smul.u32 16, %s26
        %p554 = scmp.lt.s32.totalorder %s553, 31
        %s555 = scalar_select %p554, %s553, 31
        %s556 = smul.addr %s555, 4
        %s557 = scalar_lea.vmem %s5, %s556
        %p558 = pneg %p184
        %p559 = pneg %p181
        %p560 = pneg %p205
        %p561 = pneg %p202
        %p562 = pneg %p231
        %p563 = pneg %p228
        %s564 = sand.u32 %s218, 1
        %s565 = scalar_lea.sflag [#allocation6], %s564
        %s566 = sand.u32 %s218, 1
        %s567 = smul.addr %s566, 64
        %s568 = scalar_lea.vmem [#allocation5], %s567
        %s569 = smul.u32 8, %s25
        %p570 = scmp.lt.s32.totalorder %s569, 15
        %s571 = scalar_select %p570, %s569, 15
        %s572 = smul.addr %s571, 4
        %s573 = scalar_lea.vmem %s0, %s572
        %s574 = smul.u32 8, %s25
        %p575 = scmp.lt.s32.totalorder %s26, 1
        %s576 = scalar_select %p575, %s26, 1
        %s577 = scalar_lea.vmem %s2, %s576
        %p578 = scmp.lt.s32.totalorder %s26, 1
        %s579 = scalar_select %p578, %s26, 1
        %s580 = scalar_lea.vmem %s4, %s579
        %s581 = smul.u32 16, %s26
        %p582 = scmp.lt.s32.totalorder %s581, 31
        %s583 = scalar_select %p582, %s581, 31
        %s584 = smul.addr %s583, 4
        %s585 = scalar_lea.vmem %s5, %s584
        %s586 = smul.u32 16, %s26
        %s587 = smul.u32 8, %s25
        %p588 = scmp.eq.s32.totalorder %s26, 0
        // Predicated region
        $region131: #{swiglu_mlp.1} parent=121 // pred_check
          %p589 = pneg %p588
        $region132: #{swiglu_mlp.1} parent=121 // pred_check_branch
          %591 = sbr.rel (%p589) target = $region134
        $region133: #{swiglu_mlp.1} parent=121 // pred_region
          %592 = vst [vmem:[#allocation2] sm:$0xff] 0.0
          %593 = vst [vmem:[#allocation2 + $0x8] sm:$0xff] 0.0
          %594 = vst [vmem:[#allocation2 + $0x10] sm:$0xff] 0.0
          %595 = vst [vmem:[#allocation2 + $0x18] sm:$0xff] 0.0
          %596 = vst [vmem:[#allocation2 + $0x20] sm:$0xff] 0.0
          %597 = vst [vmem:[#allocation2 + $0x28] sm:$0xff] 0.0
          %598 = vst [vmem:[#allocation2 + $0x30] sm:$0xff] 0.0
          %599 = vst [vmem:[#allocation2 + $0x38] sm:$0xff] 0.0
        $region134: #{swiglu_mlp.1} parent=121 // pred_fallthru
          _
        %v600 = vld [vmem:[%s573] sm:$0xf]
        %v601 = vld [vmem:[%s573 + $0x4] sm:$0xf]
        %v602 = vld [vmem:[%s573 + $0x8] sm:$0xf]
        %v603 = vld [vmem:[%s573 + $0xc] sm:$0xf]
        %v604 = vld [vmem:[%s573 + $0x10] sm:$0xf]
        %v605 = vld [vmem:[%s573 + $0x14] sm:$0xf]
        %v606 = vld [vmem:[%s573 + $0x18] sm:$0xf]
        %v607 = vld [vmem:[%s573 + $0x1c] sm:$0xf]
        %v608 = vld [vmem:[%s513] sm:$0xf]
        %v609 = vld [vmem:[%s513 + $0x4] sm:$0xf]
        %v610 = vld [vmem:[%s513 + $0x8] sm:$0xf]
        %v611 = vld [vmem:[%s513 + $0xc] sm:$0xf]
        %v612 = vld [vmem:[%s513 + $0x10] sm:$0xf]
        %v613 = vld [vmem:[%s513 + $0x14] sm:$0xf]
        %v614 = vld [vmem:[%s513 + $0x18] sm:$0xf]
        %v615 = vld [vmem:[%s513 + $0x1c] sm:$0xf]
        %v616 = vld [vmem:[%s513 + $0x20] sm:$0xf]
        %v617 = vld [vmem:[%s513 + $0x24] sm:$0xf]
        %v618 = vld [vmem:[%s513 + $0x28] sm:$0xf]
        %v619 = vld [vmem:[%s513 + $0x2c] sm:$0xf]
        %v620 = vld [vmem:[%s513 + $0x30] sm:$0xf]
        %v621 = vld [vmem:[%s513 + $0x34] sm:$0xf]
        %v622 = vld [vmem:[%s513 + $0x38] sm:$0xf]
        %v623 = vld [vmem:[%s513 + $0x3c] sm:$0xf]
        %v624 = vld [vmem:[%s577] sm:$0x1]
        %v626 = vperm.slane %v624, 0
        %v636 = vunpack.c.l.b16 %v600
        %v637 = vunpack.c.l.b16 %v601
        %v638 = vunpack.c.l.b16 %v602
        %v639 = vunpack.c.l.b16 %v603
        %v640 = vunpack.c.l.b16 %v604
        %v641 = vunpack.c.l.b16 %v605
        %v642 = vunpack.c.l.b16 %v606
        %v643 = vunpack.c.l.b16 %v607
        %v644 = vpack.c.b16 %v637, %v636
        %v645 = vpack.c.b16 %v639, %v638
        %v646 = vpack.c.b16 %v641, %v640
        %v647 = vpack.c.b16 %v643, %v642
        %v668 = vunpack.c.l.b16 %v608
        %v669 = vunpack.c.l.b16 %v609
        %v670 = vunpack.c.l.b16 %v610
        %v671 = vunpack.c.l.b16 %v611
        %v672 = vunpack.c.l.b16 %v612
        %v673 = vunpack.c.l.b16 %v613
        %v674 = vunpack.c.l.b16 %v614
        %v675 = vunpack.c.l.b16 %v615
        %v676 = vunpack.c.l.b16 %v616
        %v677 = vunpack.c.l.b16 %v617
        %v678 = vunpack.c.l.b16 %v618
        %v679 = vunpack.c.l.b16 %v619
        %v680 = vunpack.c.l.b16 %v620
        %v681 = vunpack.c.l.b16 %v621
        %v682 = vunpack.c.l.b16 %v622
        %v683 = vunpack.c.l.b16 %v623
        %v684 = vpack.c.b16 %v669, %v668
        %v685 = vpack.c.b16 %v671, %v670
        %v686 = vpack.c.b16 %v673, %v672
        %v687 = vpack.c.b16 %v675, %v674
        %v688 = vpack.c.b16 %v677, %v676
        %v689 = vpack.c.b16 %v679, %v678
        %v690 = vpack.c.b16 %v681, %v680
        %v691 = vpack.c.b16 %v683, %v682
        %700 = vmatpush.bf16.msra.mxu0 %v691
        %701 = vmatpush.bf16.msra.mxu0 %v690
        %702 = vmatpush.bf16.msra.mxu0 %v689
        %703 = vmatpush.bf16.msra.mxu0 %v688
        %704 = vmatpush.bf16.msra.mxu0 %v687
        %705 = vmatpush.bf16.msra.mxu0 %v686
        %706 = vmatpush.bf16.msra.mxu0 %v685
        %707 = vmatpush.bf16.msra.mxu0 %v684
        %708 = vmatmul.bf16.gmra.mxu0 %v644
        %v709 = vpop.f32.mrf.mxu0
        %v710 = vadd.f32 %v626, %v709
        %v711 = vpop.f32.mrf.mxu0
        %v712 = vadd.f32 %v626, %v711
        %713 = vmatmul.bf16.gmra.mxu0 %v645
        %v714 = vpop.f32.mrf.mxu0
        %v715 = vadd.f32 %v626, %v714
        %v716 = vpop.f32.mrf.mxu0
        %v717 = vadd.f32 %v626, %v716
        %718 = vmatmul.bf16.gmra.mxu0 %v646
        %v719 = vpop.f32.mrf.mxu0
        %v720 = vadd.f32 %v626, %v719
        %v721 = vpop.f32.mrf.mxu0
        %v722 = vadd.f32 %v626, %v721
        %723 = vmatmul.bf16.gmra.mxu0 %v647
        %v724 = vpop.f32.mrf.mxu0
        %v725 = vadd.f32 %v626, %v724
        %v726 = vpop.f32.mrf.mxu0
        %v727 = vadd.f32 %v626, %v726
        %728 = vdwg.mxu0
        %v729 = vxor.u32 %v710, 2147483648
        %v730 = vxor.u32 %v712, 2147483648
        %v731 = vxor.u32 %v715, 2147483648
        %v732 = vxor.u32 %v717, 2147483648
        %v733 = vxor.u32 %v720, 2147483648
        %v734 = vxor.u32 %v722, 2147483648
        %v735 = vxor.u32 %v725, 2147483648
        %v736 = vxor.u32 %v727, 2147483648
        %v737 = vmul.f32 %v729, 1.442695
        %v738 = vpow.pop %v737
        %v739 = vmul.f32 %v730, 1.442695
        %v740 = vpow.pop %v739
        %v741 = vmul.f32 %v731, 1.442695
        %v742 = vpow.pop %v741
        %v743 = vmul.f32 %v732, 1.442695
        %v744 = vpow.pop %v743
        %v745 = vmul.f32 %v733, 1.442695
        %v746 = vpow.pop %v745
        %v747 = vmul.f32 %v734, 1.442695
        %v748 = vpow.pop %v747
        %v749 = vmul.f32 %v735, 1.442695
        %v750 = vpow.pop %v749
        %v751 = vmul.f32 %v736, 1.442695
        %v752 = vpow.pop %v751
        %v753 = vadd.f32 %v738, 1.0
        %v754 = vadd.f32 %v740, 1.0
        %v755 = vadd.f32 %v742, 1.0
        %v756 = vadd.f32 %v744, 1.0
        %v757 = vadd.f32 %v746, 1.0
        %v758 = vadd.f32 %v748, 1.0
        %v759 = vadd.f32 %v750, 1.0
        %v760 = vadd.f32 %v752, 1.0
        %v761 = vrcp.pop %v753
        %v762 = vmul.f32 %v753, %v761
        %v763 = vsub.f32 1.0, %v762
        %v764 = vmul.f32 %v761, %v763
        %v765 = vadd.f32 %v761, %v764
        %vm766 = vweird.f32 %v753
        %vm767 = vweird.f32 %v761
        %vm768 = vmor %vm766, %vm767
        %v769 = vsel %vm768, %v761, %v765
        %v770 = vand.u32 2147483647, %v753
        %vm771 = vcmp.eq.f32.partialorder %v770, 8.507059e+37
        %v772 = vand.u32 %v753, 2147483648
        %v773 = vor.u32 1.1754944e-38, %v772
        %v774 = vsel %vm771, %v773, %v769
        %v775 = vmul.f32 1.0, %v774
        %v776 = vrcp.pop %v754
        %v777 = vmul.f32 %v754, %v776
        %v778 = vsub.f32 1.0, %v777
        %v779 = vmul.f32 %v776, %v778
        %v780 = vadd.f32 %v776, %v779
        %vm781 = vweird.f32 %v754
        %vm782 = vweird.f32 %v776
        %vm783 = vmor %vm781, %vm782
        %v784 = vsel %vm783, %v776, %v780
        %v785 = vand.u32 2147483647, %v754
        %vm786 = vcmp.eq.f32.partialorder %v785, 8.507059e+37
        %v787 = vand.u32 %v754, 2147483648
        %v788 = vor.u32 1.1754944e-38, %v787
        %v789 = vsel %vm786, %v788, %v784
        %v790 = vmul.f32 1.0, %v789
        %v791 = vrcp.pop %v755
        %v792 = vmul.f32 %v755, %v791
        %v793 = vsub.f32 1.0, %v792
        %v794 = vmul.f32 %v791, %v793
        %v795 = vadd.f32 %v791, %v794
        %vm796 = vweird.f32 %v755
        %vm797 = vweird.f32 %v791
        %vm798 = vmor %vm796, %vm797
        %v799 = vsel %vm798, %v791, %v795
        %v800 = vand.u32 2147483647, %v755
        %vm801 = vcmp.eq.f32.partialorder %v800, 8.507059e+37
        %v802 = vand.u32 %v755, 2147483648
        %v803 = vor.u32 1.1754944e-38, %v802
        %v804 = vsel %vm801, %v803, %v799
        %v805 = vmul.f32 1.0, %v804
        %v806 = vrcp.pop %v756
        %v807 = vmul.f32 %v756, %v806
        %v808 = vsub.f32 1.0, %v807
        %v809 = vmul.f32 %v806, %v808
        %v810 = vadd.f32 %v806, %v809
        %vm811 = vweird.f32 %v756
        %vm812 = vweird.f32 %v806
        %vm813 = vmor %vm811, %vm812
        %v814 = vsel %vm813, %v806, %v810
        %v815 = vand.u32 2147483647, %v756
        %vm816 = vcmp.eq.f32.partialorder %v815, 8.507059e+37
        %v817 = vand.u32 %v756, 2147483648
        %v818 = vor.u32 1.1754944e-38, %v817
        %v819 = vsel %vm816, %v818, %v814
        %v820 = vmul.f32 1.0, %v819
        %v821 = vrcp.pop %v757
        %v822 = vmul.f32 %v757, %v821
        %v823 = vsub.f32 1.0, %v822
        %v824 = vmul.f32 %v821, %v823
        %v825 = vadd.f32 %v821, %v824
        %vm826 = vweird.f32 %v757
        %vm827 = vweird.f32 %v821
        %vm828 = vmor %vm826, %vm827
        %v829 = vsel %vm828, %v821, %v825
        %v830 = vand.u32 2147483647, %v757
        %vm831 = vcmp.eq.f32.partialorder %v830, 8.507059e+37
        %v832 = vand.u32 %v757, 2147483648
        %v833 = vor.u32 1.1754944e-38, %v832
        %v834 = vsel %vm831, %v833, %v829
        %v835 = vmul.f32 1.0, %v834
        %v836 = vrcp.pop %v758
        %v837 = vmul.f32 %v758, %v836
        %v838 = vsub.f32 1.0, %v837
        %v839 = vmul.f32 %v836, %v838
        %v840 = vadd.f32 %v836, %v839
        %vm841 = vweird.f32 %v758
        %vm842 = vweird.f32 %v836
        %vm843 = vmor %vm841, %vm842
        %v844 = vsel %vm843, %v836, %v840
        %v845 = vand.u32 2147483647, %v758
        %vm846 = vcmp.eq.f32.partialorder %v845, 8.507059e+37
        %v847 = vand.u32 %v758, 2147483648
        %v848 = vor.u32 1.1754944e-38, %v847
        %v849 = vsel %vm846, %v848, %v844
        %v850 = vmul.f32 1.0, %v849
        %v851 = vrcp.pop %v759
        %v852 = vmul.f32 %v759, %v851
        %v853 = vsub.f32 1.0, %v852
        %v854 = vmul.f32 %v851, %v853
        %v855 = vadd.f32 %v851, %v854
        %vm856 = vweird.f32 %v759
        %vm857 = vweird.f32 %v851
        %vm858 = vmor %vm856, %vm857
        %v859 = vsel %vm858, %v851, %v855
        %v860 = vand.u32 2147483647, %v759
        %vm861 = vcmp.eq.f32.partialorder %v860, 8.507059e+37
        %v862 = vand.u32 %v759, 2147483648
        %v863 = vor.u32 1.1754944e-38, %v862
        %v864 = vsel %vm861, %v863, %v859
        %v865 = vmul.f32 1.0, %v864
        %v866 = vrcp.pop %v760
        %v867 = vmul.f32 %v760, %v866
        %v868 = vsub.f32 1.0, %v867
        %v869 = vmul.f32 %v866, %v868
        %v870 = vadd.f32 %v866, %v869
        %vm871 = vweird.f32 %v760
        %vm872 = vweird.f32 %v866
        %vm873 = vmor %vm871, %vm872
        %v874 = vsel %vm873, %v866, %v870
        %v875 = vand.u32 2147483647, %v760
        %vm876 = vcmp.eq.f32.partialorder %v875, 8.507059e+37
        %v877 = vand.u32 %v760, 2147483648
        %v878 = vor.u32 1.1754944e-38, %v877
        %v879 = vsel %vm876, %v878, %v874
        %v880 = vmul.f32 1.0, %v879
        %v881 = vmul.f32 %v710, %v775
        %v882 = vmul.f32 %v712, %v790
        %v883 = vmul.f32 %v715, %v805
        %v884 = vmul.f32 %v717, %v820
        %v885 = vmul.f32 %v720, %v835
        %v886 = vmul.f32 %v722, %v850
        %v887 = vmul.f32 %v725, %v865
        %v888 = vmul.f32 %v727, %v880
        %v889 = vld [vmem:[%s520] sm:$0xf]
        %v890 = vld [vmem:[%s520 + $0x4] sm:$0xf]
        %v891 = vld [vmem:[%s520 + $0x8] sm:$0xf]
        %v892 = vld [vmem:[%s520 + $0xc] sm:$0xf]
        %v893 = vld [vmem:[%s520 + $0x10] sm:$0xf]
        %v894 = vld [vmem:[%s520 + $0x14] sm:$0xf]
        %v895 = vld [vmem:[%s520 + $0x18] sm:$0xf]
        %v896 = vld [vmem:[%s520 + $0x1c] sm:$0xf]
        %v897 = vld [vmem:[%s520 + $0x20] sm:$0xf]
        %v898 = vld [vmem:[%s520 + $0x24] sm:$0xf]
        %v899 = vld [vmem:[%s520 + $0x28] sm:$0xf]
        %v900 = vld [vmem:[%s520 + $0x2c] sm:$0xf]
        %v901 = vld [vmem:[%s520 + $0x30] sm:$0xf]
        %v902 = vld [vmem:[%s520 + $0x34] sm:$0xf]
        %v903 = vld [vmem:[%s520 + $0x38] sm:$0xf]
        %v904 = vld [vmem:[%s520 + $0x3c] sm:$0xf]
        %v905 = vld [vmem:[%s580] sm:$0x1]
        %v907 = vperm.slane %v905, 0
        %v925 = vunpack.c.l.b16 %v889
        %v926 = vunpack.c.l.b16 %v890
        %v927 = vunpack.c.l.b16 %v891
        %v928 = vunpack.c.l.b16 %v892
        %v929 = vunpack.c.l.b16 %v893
        %v930 = vunpack.c.l.b16 %v894
        %v931 = vunpack.c.l.b16 %v895
        %v932 = vunpack.c.l.b16 %v896
        %v933 = vunpack.c.l.b16 %v897
        %v934 = vunpack.c.l.b16 %v898
        %v935 = vunpack.c.l.b16 %v899
        %v936 = vunpack.c.l.b16 %v900
        %v937 = vunpack.c.l.b16 %v901
        %v938 = vunpack.c.l.b16 %v902
        %v939 = vunpack.c.l.b16 %v903
        %v940 = vunpack.c.l.b16 %v904
        %v941 = vpack.c.b16 %v926, %v925
        %v942 = vpack.c.b16 %v928, %v927
        %v943 = vpack.c.b16 %v930, %v929
        %v944 = vpack.c.b16 %v932, %v931
        %v945 = vpack.c.b16 %v934, %v933
        %v946 = vpack.c.b16 %v936, %v935
        %v947 = vpack.c.b16 %v938, %v937
        %v948 = vpack.c.b16 %v940, %v939
        %957 = vmatpush.bf16.msra.mxu0 %v948
        %958 = vmatpush.bf16.msra.mxu0 %v947
        %959 = vmatpush.bf16.msra.mxu0 %v946
        %960 = vmatpush.bf16.msra.mxu0 %v945
        %961 = vmatpush.bf16.msra.mxu0 %v944
        %962 = vmatpush.bf16.msra.mxu0 %v943
        %963 = vmatpush.bf16.msra.mxu0 %v942
        %964 = vmatpush.bf16.msra.mxu0 %v941
        %965 = vmatmul.bf16.gmra.mxu0 %v644
        %v966 = vpop.f32.mrf.mxu0
        %v967 = vadd.f32 %v907, %v966
        %v968 = vpop.f32.mrf.mxu0
        %v969 = vadd.f32 %v907, %v968
        %970 = vmatmul.bf16.gmra.mxu0 %v645
        %v971 = vpop.f32.mrf.mxu0
        %v972 = vadd.f32 %v907, %v971
        %v973 = vpop.f32.mrf.mxu0
        %v974 = vadd.f32 %v907, %v973
        %975 = vmatmul.bf16.gmra.mxu0 %v646
        %v976 = vpop.f32.mrf.mxu0
        %v977 = vadd.f32 %v907, %v976
        %v978 = vpop.f32.mrf.mxu0
        %v979 = vadd.f32 %v907, %v978
        %980 = vmatmul.bf16.gmra.mxu0 %v647
        %v981 = vpop.f32.mrf.mxu0
        %v982 = vadd.f32 %v907, %v981
        %v983 = vpop.f32.mrf.mxu0
        %v984 = vadd.f32 %v907, %v983
        %985 = vdwg.mxu0
        %v986 = vmul.f32 %v881, %v967
        %v987 = vmul.f32 %v882, %v969
        %v988 = vmul.f32 %v883, %v972
        %v989 = vmul.f32 %v884, %v974
        %v990 = vmul.f32 %v885, %v977
        %v991 = vmul.f32 %v886, %v979
        %v992 = vmul.f32 %v887, %v982
        %v993 = vmul.f32 %v888, %v984
        %v994 = vpack.c.bf16 %v987, %v986
        %v995 = vpack.c.bf16 %v989, %v988
        %v996 = vpack.c.bf16 %v991, %v990
        %v997 = vpack.c.bf16 %v993, %v992
        %v998 = vld [vmem:[#allocation2] sm:$0xff]
        %v999 = vld [vmem:[#allocation2 + $0x8] sm:$0xff]
        %v1000 = vld [vmem:[#allocation2 + $0x10] sm:$0xff]
        %v1001 = vld [vmem:[#allocation2 + $0x18] sm:$0xff]
        %v1002 = vld [vmem:[#allocation2 + $0x20] sm:$0xff]
        %v1003 = vld [vmem:[#allocation2 + $0x28] sm:$0xff]
        %v1004 = vld [vmem:[#allocation2 + $0x30] sm:$0xff]
        %v1005 = vld [vmem:[#allocation2 + $0x38] sm:$0xff]
        %v1006 = vld [vmem:[%s585] sm:$0xf]
        %v1007 = vld [vmem:[%s585 + $0x4] sm:$0xf]
        %v1008 = vld [vmem:[%s585 + $0x8] sm:$0xf]
        %v1009 = vld [vmem:[%s585 + $0xc] sm:$0xf]
        %v1010 = vld [vmem:[%s585 + $0x10] sm:$0xf]
        %v1011 = vld [vmem:[%s585 + $0x14] sm:$0xf]
        %v1012 = vld [vmem:[%s585 + $0x18] sm:$0xf]
        %v1013 = vld [vmem:[%s585 + $0x1c] sm:$0xf]
        %v1014 = vld [vmem:[%s585 + $0x20] sm:$0xf]
        %v1015 = vld [vmem:[%s585 + $0x24] sm:$0xf]
        %v1016 = vld [vmem:[%s585 + $0x28] sm:$0xf]
        %v1017 = vld [vmem:[%s585 + $0x2c] sm:$0xf]
        %v1018 = vld [vmem:[%s585 + $0x30] sm:$0xf]
        %v1019 = vld [vmem:[%s585 + $0x34] sm:$0xf]
        %v1020 = vld [vmem:[%s585 + $0x38] sm:$0xf]
        %v1021 = vld [vmem:[%s585 + $0x3c] sm:$0xf]
        %v1038 = vunpack.c.l.b16 %v1006
        %v1039 = vunpack.c.l.b16 %v1007
        %v1040 = vunpack.c.l.b16 %v1008
        %v1041 = vunpack.c.l.b16 %v1009
        %v1042 = vunpack.c.l.b16 %v1010
        %v1043 = vunpack.c.l.b16 %v1011
        %v1044 = vunpack.c.l.b16 %v1012
        %v1045 = vunpack.c.l.b16 %v1013
        %v1046 = vunpack.c.l.b16 %v1014
        %v1047 = vunpack.c.l.b16 %v1015
        %v1048 = vunpack.c.l.b16 %v1016
        %v1049 = vunpack.c.l.b16 %v1017
        %v1050 = vunpack.c.l.b16 %v1018
        %v1051 = vunpack.c.l.b16 %v1019
        %v1052 = vunpack.c.l.b16 %v1020
        %v1053 = vunpack.c.l.b16 %v1021
        %v1054 = vpack.c.b16 %v1039, %v1038
        %v1055 = vpack.c.b16 %v1041, %v1040
        %v1056 = vpack.c.b16 %v1043, %v1042
        %v1057 = vpack.c.b16 %v1045, %v1044
        %v1058 = vpack.c.b16 %v1047, %v1046
        %v1059 = vpack.c.b16 %v1049, %v1048
        %v1060 = vpack.c.b16 %v1051, %v1050
        %v1061 = vpack.c.b16 %v1053, %v1052
        %1070 = vmatpush.bf16.msra.mxu0 %v1061
        %1071 = vmatpush.bf16.msra.mxu0 %v1060
        %1072 = vmatpush.bf16.msra.mxu0 %v1059
        %1073 = vmatpush.bf16.msra.mxu0 %v1058
        %1074 = vmatpush.bf16.msra.mxu0 %v1057
        %1075 = vmatpush.bf16.msra.mxu0 %v1056
        %1076 = vmatpush.bf16.msra.mxu0 %v1055
        %1077 = vmatpush.bf16.msra.mxu0 %v1054
        %1078 = vmatmul.bf16.gmra.mxu0 %v994
        %v1079 = vpop.f32.mrf.mxu0
        %v1080 = vadd.f32 0.0, %v1079
        %v1081 = vpop.f32.mrf.mxu0
        %v1082 = vadd.f32 0.0, %v1081
        %1083 = vmatmul.bf16.gmra.mxu0 %v995
        %v1084 = vpop.f32.mrf.mxu0
        %v1085 = vadd.f32 0.0, %v1084
        %v1086 = vpop.f32.mrf.mxu0
        %v1087 = vadd.f32 0.0, %v1086
        %1088 = vmatmul.bf16.gmra.mxu0 %v996
        %v1089 = vpop.f32.mrf.mxu0
        %v1090 = vadd.f32 0.0, %v1089
        %v1091 = vpop.f32.mrf.mxu0
        %v1092 = vadd.f32 0.0, %v1091
        %1093 = vmatmul.bf16.gmra.mxu0 %v997
        %v1094 = vpop.f32.mrf.mxu0
        %v1095 = vadd.f32 0.0, %v1094
        %v1096 = vpop.f32.mrf.mxu0
        %v1097 = vadd.f32 0.0, %v1096
        %1098 = vdwg.mxu0
        %v1099 = vadd.f32 %v998, %v1080
        %v1100 = vadd.f32 %v999, %v1082
        %v1101 = vadd.f32 %v1000, %v1085
        %v1102 = vadd.f32 %v1001, %v1087
        %v1103 = vadd.f32 %v1002, %v1090
        %v1104 = vadd.f32 %v1003, %v1092
        %v1105 = vadd.f32 %v1004, %v1095
        %v1106 = vadd.f32 %v1005, %v1097
        %1107 = vst [vmem:[#allocation2] sm:$0xff] %v1099
        %1108 = vst [vmem:[#allocation2 + $0x8] sm:$0xff] %v1100
        %1109 = vst [vmem:[#allocation2 + $0x10] sm:$0xff] %v1101
        %1110 = vst [vmem:[#allocation2 + $0x18] sm:$0xff] %v1102
        %1111 = vst [vmem:[#allocation2 + $0x20] sm:$0xff] %v1103
        %1112 = vst [vmem:[#allocation2 + $0x28] sm:$0xff] %v1104
        %1113 = vst [vmem:[#allocation2 + $0x30] sm:$0xff] %v1105
        %1114 = vst [vmem:[#allocation2 + $0x38] sm:$0xff] %v1106
        %p1115 = scmp.eq.s32.totalorder %s26, 1
        // Predicated region
        $region135: #{swiglu_mlp.1} parent=121 // pred_check
          %p1116 = pneg %p1115
        $region136: #{swiglu_mlp.1} parent=121 // pred_check_branch
          %1118 = sbr.rel (%p1116) target = $region138
        $region137: #{swiglu_mlp.1} parent=121 // pred_region
          %v1119 = vld [vmem:[#allocation2] sm:$0xff]
          %v1120 = vld [vmem:[#allocation2 + $0x8] sm:$0xff]
          %v1121 = vld [vmem:[#allocation2 + $0x10] sm:$0xff]
          %v1122 = vld [vmem:[#allocation2 + $0x18] sm:$0xff]
          %v1123 = vld [vmem:[#allocation2 + $0x20] sm:$0xff]
          %v1124 = vld [vmem:[#allocation2 + $0x28] sm:$0xff]
          %v1125 = vld [vmem:[#allocation2 + $0x30] sm:$0xff]
          %v1126 = vld [vmem:[#allocation2 + $0x38] sm:$0xff]
          %v1127 = vld [vmem:[%s6] sm:$0x1]
          %v1129 = vperm.slane %v1127, 0
          %v1131 = vadd.f32 %v1119, %v1129
          %v1132 = vadd.f32 %v1120, %v1129
          %v1133 = vadd.f32 %v1121, %v1129
          %v1134 = vadd.f32 %v1122, %v1129
          %v1135 = vadd.f32 %v1123, %v1129
          %v1136 = vadd.f32 %v1124, %v1129
          %v1137 = vadd.f32 %v1125, %v1129
          %v1138 = vadd.f32 %v1126, %v1129
          %1139 = vst [vmem:[%s568] sm:$0xff] %v1131
          %1140 = vst [vmem:[%s568 + $0x8] sm:$0xff] %v1132
          %1141 = vst [vmem:[%s568 + $0x10] sm:$0xff] %v1133
          %1142 = vst [vmem:[%s568 + $0x18] sm:$0xff] %v1134
          %1143 = vst [vmem:[%s568 + $0x20] sm:$0xff] %v1135
          %1144 = vst [vmem:[%s568 + $0x28] sm:$0xff] %v1136
          %1145 = vst [vmem:[%s568 + $0x30] sm:$0xff] %v1137
          %1146 = vst [vmem:[%s568 + $0x38] sm:$0xff] %v1138
        $region138: #{swiglu_mlp.1} parent=121 // pred_fallthru
          _
        %s1147 = sand.u32 %s218, 1
        %s1148 = scalar_lea.sflag [#allocation6], %s1147
        %s1149 = sand.u32 %s218, 1
        %s1150 = smul.addr %s1149, 64
        %s1151 = scalar_lea.vmem [#allocation5], %s1150
        // Predicated region
        $region139: #{swiglu_mlp.1} parent=121 // pred_check
          %p1152 = pneg %p228
        $region140: #{swiglu_mlp.1} parent=121 // pred_check_branch
          %1154 = sbr.rel (%p1152) target = $region142
        $region141: #{swiglu_mlp.1} parent=121 // pred_region
          %s1155 = smul.u32 8, %s25
          %1157 = vsyncadd %s1148, 0
          %s1158 = smul.addr %s1155, 8
          %s1159 = scalar_lea.hbm %s7, %s1158
          %s1160 = sshll.u32 %s1151, 4
          %s1161 = int_to_ptr.vmem [resolvable:$true] %s1160
          %s1162 = sshll.u32 %s1159, 4
          %s1163 = int_to_ptr.hbm [resolvable:$true] %s1162
          %1168 = dma.vmem_to_hbm [thread:$0]  %s1161, 1024, %s1163, %s1148, 128, 128, 8
        $region142: #{swiglu_mlp.1} parent=121 // pred_fallthru
          _
      $region122: #{swiglu_mlp.1} parent=5 // pred_fallthru
        _
      %p1169 = scmp.le.s32.totalorder 2, %s16
      // Predicated region
      $region143: #{swiglu_mlp.1} parent=5 // pred_check
        %p1170 = pneg %p1169
      $region144: #{swiglu_mlp.1} parent=5 // pred_check_branch
        %1172 = sbr.rel (%p1170) target = $region146
      $region145: #{swiglu_mlp.1} parent=5 // pred_region
        %s1173 = ssub.s32 %s16, 2
        // Predicated region
        $region147: #{swiglu_mlp.1} parent=145 // pred_check
          %p1174 = pneg %p234
        $region148: #{swiglu_mlp.1} parent=145 // pred_check_branch
          %1176 = sbr.rel (%p1174) target = $region150
        $region149: #{swiglu_mlp.1} parent=145 // pred_region
          %s1177 = sand.u32 %s219, 1
          %s1178 = scalar_lea.sflag [#allocation6], %s1177
          %s1179 = sand.u32 %s219, 1
          %s1180 = smul.addr %s1179, 64
          %s1181 = scalar_lea.vmem [#allocation5], %s1180
          %1183 = dma.done %s1178, 1024
        $region150: #{swiglu_mlp.1} parent=145 // pred_fallthru
          _
      $region146: #{swiglu_mlp.1} parent=5 // pred_fallthru
        _
    $region6: #{swiglu_mlp.1} parent=1 // loop_footer
      %s20 = sadd.s32 1, %s16
    $region7: #{swiglu_mlp.1} parent=1 // loop_footer_branch
      %15 = sbr.rel target = $region3
    $region8: #{swiglu_mlp.1} parent=1 // loop_exit
      _
    %1184 = vsyncpa [#allocation6], 1
    %s1185 = scalar_lea.sflag [#allocation6], 1
    %1186 = vsyncpa %s1185, 1

</llo_original>
